<compile_context>
chip_gen: v6e
topology: v6e:2x2x1
jax: 0.10.0
libtpu: 0.0.40
codegen_flags: <defaults>
</compile_context>

<pallas_src>
import functools

import jax
import jax.numpy as jnp
from jax.experimental import pallas as pl
from jax.experimental.pallas import tpu as pltpu

RMS_EPS = 1e-6


def _round_up(a: int, b: int) -> int:
    return (a + b - 1) // b * b


def _vmem_capacity_bytes() -> int:
    """Best-effort per-TensorCore VMEM capacity; conservative fallback."""
    try:
        kind = jax.devices()[0].device_kind.lower()
    except Exception:
        kind = ""
    if "v7" in kind:
        return 64 << 20
    try:
        return int(pltpu.get_tpu_info().vmem_capacity_bytes)
    except Exception:
        pass
    if any(g in kind for g in ("v4", "v5", "v6")):
        return 128 << 20
    return 64 << 20  # unknown chip: assume v7x-class 64 MiB per TensorCore


def _vmem_estimate(tm: int, ti: int, H: int, x_b: int, o_b: int, w_b: int) -> int:
    """Steady-state VMEM model: resident row blocks, double-buffered weight
    streams, scratch, plus the in-kernel f32 temporaries (RMSNorm slab, h13)."""
    est = 2 * tm * H * x_b            # x row tile
    est += 2 * H * 4                  # rmsnorm gain (tiny)
    est += 2 * H * (2 * ti) * w_b     # fused [w1|w3] tile, double-buffered
    est += 2 * ti * H * w_b           # w2 tile, double-buffered
    est += 2 * tm * H * o_b           # output tile
    est += tm * H * w_b               # cached RMSNorm (xn) scratch, MXU dtype
    est += tm * H * 4                 # f32 accumulator scratch
    est += tm * H * 4 + 2 * tm * ti * 4   # f32 temporaries (prologue + gate)
    return est


def _ffn_kernel(ti, x_ref, g_ref, w13_ref, w2_ref, o_ref, xn_ref, acc_ref):
    # x_ref: [TM, H]   g_ref: [1, H]
    # w13_ref: [H, 2*TI] (columns [w1_k | w3_k])   w2_ref: [TI, H]
    # o_ref: [TM, H]
    # xn_ref: [TM, H] scratch in MXU input dtype, acc_ref: [TM, H] f32 scratch
    k = pl.program_id(2)

    @pl.when(k == 0)
    def _():
        # RMSNorm in f32, computed once per row tile; cached in MXU dtype.
        xf = x_ref[...].astype(jnp.float32)
        var = jnp.mean(xf * xf, axis=-1, keepdims=True)
        xn = xf * jax.lax.rsqrt(var + RMS_EPS) * g_ref[...].astype(jnp.float32)
        xn_ref[...] = xn.astype(xn_ref.dtype)
        acc_ref[...] = jnp.zeros_like(acc_ref)

    # One fused MXU matmul per step (single LHS push of the activation tile);
    # accumulate in f32 via preferred_element_type.
    xn = xn_ref[...]
    h13 = jnp.dot(xn, w13_ref[...], preferred_element_type=jnp.float32)
    h1 = h13[:, :ti]
    h3 = h13[:, ti:]

    # SiLU(w1) * w3 on the (TM, TI) slab (hides under the matmuls).
    h = (h1 * jax.nn.sigmoid(h1)) * h3

    acc_ref[...] += jnp.dot(h.astype(w2_ref.dtype), w2_ref[...],
                            preferred_element_type=jnp.float32)

    @pl.when(k == pl.num_programs(2) - 1)
    def _():
        o_ref[...] = acc_ref[...].astype(o_ref.dtype)


@functools.partial(jax.jit, static_argnames=("tile_m", "tile_i", "num_k_splits"))
def feed_forward(x, norm_weight, w1, w3, w2, *,
                 tile_m=None, tile_i=None, num_k_splits=None):
    """x: [B, S, H]; norm_weight: [H]; w1/w3: [H, I]; w2: [I, H]."""
    B, S, H = x.shape
    I = w1.shape[1]
    N = B * S

    x_b = jnp.dtype(x.dtype).itemsize
    w_b = jnp.dtype(w1.dtype).itemsize
    vmem_cap = _vmem_capacity_bytes()
    budget = int(vmem_cap * 0.78)

    # Row-tile sublane granularity must cover x, the xn scratch (weight dtype)
    # and the f32 accumulator.
    sub = max(8, 32 // x_b, 32 // w_b)
    n_pad_min = _round_up(N, sub)

    # Candidate tiles, largest first.  Bigger tm => higher arithmetic intensity
    # vs streamed weight bytes; candidates are sized per VMEM generation.
    if tile_i is not None:
        ti_cands = [_round_up(min(tile_i, _round_up(I, 128)), 128)]
    else:
        base_i = [512, 256, 128] if vmem_cap >= (100 << 20) else [256, 128]
        ti_cands = sorted({_round_up(min(t, _round_up(I, 128)), 128) for t in base_i},
                          reverse=True)
    if tile_m is not None:
        tm_cands = [max(sub, _round_up(min(tile_m, n_pad_min), sub))]
    else:
        base_m = ([1024, 768, 512, 384, 256, 128, 64, 32, 16, 8]
                  if vmem_cap >= (100 << 20)
                  else [512, 384, 256, 128, 64, 32, 16, 8])
        tm_cands = sorted({max(sub, _round_up(min(t, n_pad_min), sub)) for t in base_m},
                          reverse=True)

    tm, ti = tm_cands[-1], ti_cands[-1]          # smallest pair as fallback
    chosen = False
    for cand_tm in tm_cands:
        for cand_ti in ti_cands:
            if _vmem_estimate(cand_tm, cand_ti, H, x_b, x_b, w_b) <= budget:
                tm, ti = cand_tm, cand_ti
                chosen = True
                break
        if chosen:
            break

    n_pad = _round_up(N, tm)
    row_tiles = n_pad // tm
    total_k = pl.cdiv(I, ti)

    # Decode / small-N path: split the reduction axis across `splits` parallel
    # partial sums so a dual-TC chip streams disjoint weight halves.
    if num_k_splits is not None:
        splits = max(1, int(num_k_splits))
    elif row_tiles == 1 and total_k >= 2 and vmem_cap < (100 << 20):
        splits = 2
    else:
        splits = 1
    k_total = _round_up(total_k, splits)
    k_per_split = k_total // splits
    i_pad = k_total * ti

    # ---- operand preparation ---------------------------------------------
    x2d = x.reshape(N, H)
    if n_pad != N:
        x2d = jnp.pad(x2d, ((0, n_pad - N), (0, 0)))
    g2d = norm_weight.reshape(1, H)
    if i_pad != I:
        # Zero-padding the intermediate dim is exact: silu(0)*0 == 0 and the
        # padded w2 rows multiply zeros.
        w1 = jnp.pad(w1, ((0, 0), (0, i_pad - I)))
        w3 = jnp.pad(w3, ((0, 0), (0, i_pad - I)))
        w2 = jnp.pad(w2, ((0, i_pad - I), (0, 0)))
    # Fuse gate/up projections into one streamed weight, laid out so the
    # (H, 2*ti) block at index k is exactly [w1_k | w3_k].
    w13 = jnp.concatenate(
        [w1.reshape(H, k_total, ti), w3.astype(w1.dtype).reshape(H, k_total, ti)],
        axis=-1).reshape(H, 2 * i_pad)

    out_dtype = x.dtype if splits == 1 else jnp.float32
    o_b = jnp.dtype(out_dtype).itemsize

    grid = (splits, row_tiles, k_per_split)
    kps = k_per_split  # static closure for the index maps

    est = _vmem_estimate(tm, ti, H, x_b, o_b, w_b)
    vmem_limit = min(max(int(est * 1.15) + (2 << 20), 32 << 20),
                     int(vmem_cap * 0.85))

    cost = pl.CostEstimate(
        flops=6 * N * H * I,
        transcendentals=N * i_pad,
        bytes_accessed=(row_tiles * (3 * H * i_pad) * w_b
                        + N * H * (x_b + o_b) + H * 4),
    )

    out = pl.pallas_call(
        functools.partial(_ffn_kernel, ti),
        out_shape=jax.ShapeDtypeStruct((splits, n_pad, H), out_dtype),
        grid_spec=pltpu.PrefetchScalarGridSpec(
            num_scalar_prefetch=0,
            grid=grid,
            in_specs=[
                pl.BlockSpec((tm, H), lambda s, i, k: (i, 0)),        # x rows
                pl.BlockSpec((1, H), lambda s, i, k: (0, 0)),         # rmsnorm gain
                pl.BlockSpec((H, 2 * ti),
                             lambda s, i, k: (0, s * kps + k)),       # fused [w1|w3]
                pl.BlockSpec((ti, H),
                             lambda s, i, k: (s * kps + k, 0)),       # w2 (down)
            ],
            out_specs=pl.BlockSpec((None, tm, H), lambda s, i, k: (s, i, 0)),
            scratch_shapes=[
                pltpu.VMEM((tm, H), w1.dtype),     # cached RMSNorm, MXU dtype
                pltpu.VMEM((tm, H), jnp.float32),  # output accumulator
            ],
        ),
        compiler_params=pltpu.CompilerParams(
            dimension_semantics=("parallel", "parallel", "arbitrary"),
            vmem_limit_bytes=vmem_limit,
        ),
        cost_estimate=cost,
    )(x2d, g2d, w13, w2)

    if splits > 1:
        out2d = jnp.sum(out, axis=0).astype(x.dtype)
    else:
        out2d = out[0]
    return out2d[:N].reshape(B, S, H)


def _reference(x, norm_weight, w1, w3, w2):
    """Mirrors the kernel's dtype policy (MXU inputs in the weight dtype,
    f32 accumulation and f32 RMSNorm/gating)."""
    cd = w1.dtype
    xf = x.astype(jnp.float32)
    var = jnp.mean(xf * xf, axis=-1, keepdims=True)
    xn = (xf * jax.lax.rsqrt(var + RMS_EPS)
          * norm_weight.astype(jnp.float32)).astype(cd)
    h1 = jnp.dot(xn, w1, preferred_element_type=jnp.float32)
    h3 = jnp.dot(xn, w3, preferred_element_type=jnp.float32)
    h = (h1 * jax.nn.sigmoid(h1)) * h3
    out = jnp.dot(h.astype(cd), w2, preferred_element_type=jnp.float32)
    return out.astype(x.dtype)


def _make_inputs(B, S, H, I, dtype):
    ks = jax.random.split(jax.random.PRNGKey(0), 5)
    x = jax.random.normal(ks[0], (B, S, H), dtype=jnp.float32).astype(dtype)
    g = (1.0 + 0.02 * jax.random.normal(ks[1], (H,), dtype=jnp.float32)).astype(dtype)
    # weights stored as [in, out] (pre-transposed relative to torch Linear)
    w1 = (0.02 * jax.random.normal(ks[2], (H, I), dtype=jnp.float32)).astype(dtype)
    w3 = (0.02 * jax.random.normal(ks[3], (H, I), dtype=jnp.float32)).astype(dtype)
    w2 = (0.02 * jax.random.normal(ks[4], (I, H), dtype=jnp.float32)).astype(dtype)
    return x, g, w1, w3, w2


if __name__ == "__main__":
    # TODO(synk): LoRA / MixLoRA (MoE) branches of FeedForward not implemented;
    # only the base dense path (len(moes_) == 0, no active LoRA adapters).

    # 1) Base dense path, f32, auto tiling (batch=2, seq=8, hidden=128, I=256).
    args = _make_inputs(2, 8, 128, 256, jnp.float32)
    out = jax.block_until_ready(feed_forward(*args))
    ref = _reference(*args)
    assert out.shape == args[0].shape
    assert jnp.allclose(out.astype(jnp.float32), ref.astype(jnp.float32),
                        atol=1e-4, rtol=1e-4)

    # 2) Decode-style tiny N with a forced 2-way reduction split
    #    (exercises the dual-TensorCore partial-sum path).
    args = _make_inputs(1, 4, 128, 512, jnp.float32)
    out = jax.block_until_ready(
        feed_forward(*args, tile_i=128, num_k_splits=2))
    ref = _reference(*args)
    assert jnp.allclose(out.astype(jnp.float32), ref.astype(jnp.float32),
                        atol=1e-4, rtol=1e-4)

    # 3) bf16 activations/weights (MXU-native dtype); looser tolerance since
    #    xn is quantized to bf16 before the MXU dots (intended trade-off).
    args = _make_inputs(2, 8, 256, 512, jnp.bfloat16)
    out = jax.block_until_ready(feed_forward(*args))
    ref = _reference(*args)
    assert jnp.allclose(out.astype(jnp.float32), ref.astype(jnp.float32),
                        atol=2e-2, rtol=2e-2)

    print("KERNEL_OK")
</pallas_src>

<mosaic_0001>
module attributes {stable_mosaic.version = 11 : i64} {
  func.func @_ffn_kernel(%arg0: i32, %arg1: i32, %arg2: i32, %arg3: memref<16x128xf32, #tpu.memory_space<vmem>>, %arg4: memref<1x128xf32, #tpu.memory_space<vmem>>, %arg5: memref<128x512xf32, #tpu.memory_space<vmem>>, %arg6: memref<256x128xf32, #tpu.memory_space<vmem>>, %arg7: memref<1x16x128xf32, #tpu.memory_space<vmem>>, %arg8: memref<16x128xf32, #tpu.memory_space<vmem>>, %arg9: memref<16x128xf32, #tpu.memory_space<vmem>>) attributes {dimension_semantics = [#tpu.dimension_semantics<parallel>, #tpu.dimension_semantics<parallel>, #tpu.dimension_semantics<arbitrary>], iteration_bounds = array<i64: 1, 1, 1>, scalar_prefetch = 0 : i64, scratch_operands = 2 : i64, tpu.core_type = #tpu.core_type<tc>, window_params = [{transform_indices = @transform_0, window_bounds = array<i64: 16, 128>}, {pipeline_mode = #tpu.pipeline_mode<synchronous>, transform_indices = @transform_1, window_bounds = array<i64: 1, 128>}, {transform_indices = @transform_2, window_bounds = array<i64: 128, 512>}, {transform_indices = @transform_3, window_bounds = array<i64: 256, 128>}, {transform_indices = @transform_4, window_bounds = array<i64: 1, 16, 128>}]} {
    %c0_i32 = arith.constant 0 : i32
    %0 = arith.cmpi eq, %arg2, %c0_i32 : i32
    %1 = arith.extui %0 : i1 to i32
    %c0_i32_0 = arith.constant 0 : i32
    %2 = arith.cmpi ne, %1, %c0_i32_0 : i32
    scf.if %2 {
      %c0_14 = arith.constant 0 : index
      %c0_15 = arith.constant 0 : index
      %23 = vector.load %arg3[%c0_14, %c0_15] : memref<16x128xf32, #tpu.memory_space<vmem>>, vector<16x128xf32>
      %24 = arith.mulf %23, %23 : vector<16x128xf32>
      %cst_16 = arith.constant dense<0.000000e+00> : vector<16xf32>
      %25 = vector.multi_reduction <add>, %24, %cst_16 [1] : vector<16x128xf32> to vector<16xf32>
      %26 = vector.shape_cast %25 : vector<16xf32> to vector<16x1xf32>
      %cst_17 = arith.constant 1.280000e+02 : f32
      %27 = vector.broadcast %cst_17 : f32 to vector<16x1xf32>
      %28 = arith.divf %26, %27 : vector<16x1xf32>
      %cst_18 = arith.constant 9.99999997E-7 : f32
      %29 = vector.broadcast %cst_18 : f32 to vector<16x1xf32>
      %30 = arith.addf %28, %29 : vector<16x1xf32>
      %31 = math.rsqrt %30 : vector<16x1xf32>
      %32 = vector.broadcast %31 : vector<16x1xf32> to vector<16x128xf32>
      %33 = arith.mulf %23, %32 : vector<16x128xf32>
      %c0_19 = arith.constant 0 : index
      %c0_20 = arith.constant 0 : index
      %34 = vector.load %arg4[%c0_19, %c0_20] : memref<1x128xf32, #tpu.memory_space<vmem>>, vector<1x128xf32>
      %35 = vector.broadcast %34 : vector<1x128xf32> to vector<16x128xf32>
      %36 = arith.mulf %33, %35 : vector<16x128xf32>
      %c0_21 = arith.constant 0 : index
      %c0_22 = arith.constant 0 : index
      %37 = vector.load %arg8[%c0_21, %c0_22] : memref<16x128xf32, #tpu.memory_space<vmem>>, vector<16x128xf32>
      tpu.vector_store %arg8[%c0_21, %c0_22], %36 {strides = array<i32>} : memref<16x128xf32, #tpu.memory_space<vmem>>, vector<16x128xf32>,
      %cst_23 = arith.constant 0.000000e+00 : f32
      %38 = vector.broadcast %cst_23 : f32 to vector<16x128xf32>
      %c0_24 = arith.constant 0 : index
      %c0_25 = arith.constant 0 : index
      %39 = vector.load %arg9[%c0_24, %c0_25] : memref<16x128xf32, #tpu.memory_space<vmem>>, vector<16x128xf32>
      tpu.vector_store %arg9[%c0_24, %c0_25], %38 {strides = array<i32>} : memref<16x128xf32, #tpu.memory_space<vmem>>, vector<16x128xf32>,
    } else {
    }
    %c0 = arith.constant 0 : index
    %c0_1 = arith.constant 0 : index
    %3 = vector.load %arg8[%c0, %c0_1] : memref<16x128xf32, #tpu.memory_space<vmem>>, vector<16x128xf32>
    %c0_2 = arith.constant 0 : index
    %c0_3 = arith.constant 0 : index
    %4 = vector.load %arg5[%c0_2, %c0_3] : memref<128x512xf32, #tpu.memory_space<vmem>>, vector<128x512xf32>
    %cst = arith.constant dense<0.000000e+00> : vector<16x512xf32>
    %5 = tpu.matmul %3, %4, %cst {dimension_numbers = #tpu.dot_dimension_numbers<[1], [0], [0], [1], [0, 0, 1, 1], [], []>} : vector<16x128xf32>, vector<128x512xf32>, vector<16x512xf32> -> vector<16x512xf32>
    %6 = vector.extract_strided_slice %5 {offsets = [0, 0], sizes = [16, 256], strides = [1, 1]} : vector<16x512xf32> to vector<16x256xf32>
    %7 = vector.extract_strided_slice %5 {offsets = [0, 256], sizes = [16, 256], strides = [1, 1]} : vector<16x512xf32> to vector<16x256xf32>
    %8 = arith.negf %6 : vector<16x256xf32>
    %9 = math.exp %8 : vector<16x256xf32>
    %cst_4 = arith.constant 1.000000e+00 : f32
    %10 = vector.broadcast %cst_4 : f32 to vector<16x256xf32>
    %11 = arith.addf %10, %9 : vector<16x256xf32>
    %12 = arith.divf %10, %11 : vector<16x256xf32>
    %13 = arith.mulf %6, %12 : vector<16x256xf32>
    %14 = arith.mulf %13, %7 : vector<16x256xf32>
    %c0_5 = arith.constant 0 : index
    %c0_6 = arith.constant 0 : index
    %15 = vector.load %arg9[%c0_5, %c0_6] : memref<16x128xf32, #tpu.memory_space<vmem>>, vector<16x128xf32>
    %c0_7 = arith.constant 0 : index
    %c0_8 = arith.constant 0 : index
    %16 = vector.load %arg6[%c0_7, %c0_8] : memref<256x128xf32, #tpu.memory_space<vmem>>, vector<256x128xf32>
    %cst_9 = arith.constant dense<0.000000e+00> : vector<16x128xf32>
    %17 = tpu.matmul %14, %16, %cst_9 {dimension_numbers = #tpu.dot_dimension_numbers<[1], [0], [0], [1], [0, 0, 1, 1], [], []>} : vector<16x256xf32>, vector<256x128xf32>, vector<16x128xf32> -> vector<16x128xf32>
    %18 = arith.addf %15, %17 : vector<16x128xf32>
    %c0_10 = arith.constant 0 : index
    %c0_11 = arith.constant 0 : index
    %19 = vector.load %arg9[%c0_10, %c0_11] : memref<16x128xf32, #tpu.memory_space<vmem>>, vector<16x128xf32>
    tpu.vector_store %arg9[%c0_10, %c0_11], %18 {strides = array<i32>} : memref<16x128xf32, #tpu.memory_space<vmem>>, vector<16x128xf32>,
    %c0_i32_12 = arith.constant 0 : i32
    %20 = arith.cmpi eq, %arg2, %c0_i32_12 : i32
    %21 = arith.extui %20 : i1 to i32
    %c0_i32_13 = arith.constant 0 : i32
    %22 = arith.cmpi ne, %21, %c0_i32_13 : i32
    scf.if %22 {
      %c0_14 = arith.constant 0 : index
      %c0_15 = arith.constant 0 : index
      %23 = vector.load %arg9[%c0_14, %c0_15] : memref<16x128xf32, #tpu.memory_space<vmem>>, vector<16x128xf32>
      %c0_16 = arith.constant 0 : index
      %c0_17 = arith.constant 0 : index
      %c0_18 = arith.constant 0 : index
      %24 = vector.load %arg7[%c0_16, %c0_17, %c0_18] : memref<1x16x128xf32, #tpu.memory_space<vmem>>, vector<1x16x128xf32>
      %25 = vector.shape_cast %24 : vector<1x16x128xf32> to vector<16x128xf32>
      %26 = vector.shape_cast %23 : vector<16x128xf32> to vector<1x16x128xf32>
      tpu.vector_store %arg7[%c0_16, %c0_17, %c0_18], %26 {strides = array<i32>} : memref<1x16x128xf32, #tpu.memory_space<vmem>>, vector<1x16x128xf32>,
    } else {
    }
    return
  }
  func.func @transform_0(%arg0: i32, %arg1: i32, %arg2: i32) -> (i32, i32) {
    %c0_i32 = arith.constant 0 : i32
    %c0_i32_0 = arith.constant 0 : i32
    return %arg1, %c0_i32 : i32, i32
  }
  func.func @transform_1(%arg0: i32, %arg1: i32, %arg2: i32) -> (i32, i32) {
    %c0_i32 = arith.constant 0 : i32
    %c0_i32_0 = arith.constant 0 : i32
    %c0_i32_1 = arith.constant 0 : i32
    return %c0_i32, %c0_i32_0 : i32, i32
  }
  func.func @transform_2(%arg0: i32, %arg1: i32, %arg2: i32) -> (i32, i32) {
    %c1_i32 = arith.constant 1 : i32
    %0 = arith.muli %arg0, %c1_i32 : i32
    %1 = arith.addi %0, %arg2 : i32
    %c0_i32 = arith.constant 0 : i32
    %c0_i32_0 = arith.constant 0 : i32
    return %c0_i32, %1 : i32, i32
  }
  func.func @transform_3(%arg0: i32, %arg1: i32, %arg2: i32) -> (i32, i32) {
    %c1_i32 = arith.constant 1 : i32
    %0 = arith.muli %arg0, %c1_i32 : i32
    %1 = arith.addi %0, %arg2 : i32
    %c0_i32 = arith.constant 0 : i32
    %c0_i32_0 = arith.constant 0 : i32
    return %1, %c0_i32 : i32, i32
  }
  func.func @transform_4(%arg0: i32, %arg1: i32, %arg2: i32) -> (i32, i32, i32) {
    %c0_i32 = arith.constant 0 : i32
    %c0_i32_0 = arith.constant 0 : i32
    return %arg0, %arg1, %c0_i32 : i32, i32, i32
  }
}

</mosaic_0001>

<llo_original>
// kernel: feed_forward.1
$region0: #{feed_forward.1}
  #allocation0 [shape = 'u32[]', space=smem, size = 0x4, offset = 0x4, fixed_abs, tag = 'smem constant byte address 0x4 - core index']
  #allocation1 [shape = 'u32[144,128]{1,0:T(1,128)}', space=vmem, size = 0x12000, scoped, tag = 'internal scratch']
  #allocation2 [shape = 'f32[16,128]{1,0:T(8,128)}', space=vmem, size = 0x2000, scoped, tag = 'scratch operand']
  #allocation3 [shape = 'f32[16,128]{1,0:T(8,128)}', space=vmem, size = 0x2000, scoped, tag = 'scratch operand']
  %s0 = inlined_call_operand.vmem [shape: f32[16,128], index: 0, kind: input, shape index: {}]
  %s1 = inlined_call_operand.vmem [shape: f32[1,128], index: 1, kind: input, shape index: {}]
  %s2 = inlined_call_operand.vmem [shape: f32[128,512], index: 2, kind: input, shape index: {}]
  %s3 = inlined_call_operand.vmem [shape: f32[256,128], index: 3, kind: input, shape index: {}]
  %s4 = inlined_call_operand.hbm [shape: f32[1,16,128], index: 4, kind: output, shape index: {}]
  %s5 = sld [smem:[#allocation0]]
  $region34: #{feed_forward.1} parent=0
    _
  %s7 = ssub.s32 1, %s5
  %s8 = scalar_select 0, %s7, %s5
  $region1: #{feed_forward.1} parent=0
    #allocation4 [shape = 'u8[8192]{0}', space=vmem, size = 0x2000, scoped, tag = 'output window, operand 0, single buffered']
    #allocation5 [shape = 's32[1]{0}', space=sflag, size = 0x4, scoped, tag = 'scoped memory for feed_forward.1']
    %9 = vsyncpa [#allocation5], 0
    // Predicated region
    $region2: #{feed_forward.1} parent=1 // pred_check
      _
    $region3: #{feed_forward.1} parent=1 // pred_check_branch
      %11 = sbr.rel (0) target = $region5
    $region4: #{feed_forward.1} parent=1 // pred_region
      _
    $region5: #{feed_forward.1} parent=1 // pred_fallthru
      _
    // Predicated region
    $region6: #{feed_forward.1} parent=1 // pred_check
      _
    $region7: #{feed_forward.1} parent=1 // pred_check_branch
      %13 = sbr.rel (0) target = $region9
    $region8: #{feed_forward.1} parent=1 // pred_region
      _
    $region9: #{feed_forward.1} parent=1 // pred_fallthru
      _
    // Predicated region
    $region10: #{feed_forward.1} parent=1 // pred_check
      _
    $region11: #{feed_forward.1} parent=1 // pred_check_branch
      %15 = sbr.rel (0) target = $region13
    $region12: #{feed_forward.1} parent=1 // pred_region
      %s16 = sadd.s32 0, 0
      %s17 = smul.u32 4, %s16
      %p18 = scmp.lt.s32.totalorder %s17, 3
      %s19 = scalar_select %p18, %s17, 3
      %s20 = smul.addr %s19, 8
      %s21 = scalar_lea.vmem %s2, %s20
      %s22 = sadd.s32 0, 0
      %s23 = smul.u32 4, %s22
    $region13: #{feed_forward.1} parent=1 // pred_fallthru
      _
    // Predicated region
    $region14: #{feed_forward.1} parent=1 // pred_check
      _
    $region15: #{feed_forward.1} parent=1 // pred_check_branch
      %25 = sbr.rel (0) target = $region17
    $region16: #{feed_forward.1} parent=1 // pred_region
      %s26 = sadd.s32 0, 0
      %s27 = smul.u32 32, %s26
      %p28 = scmp.lt.s32.totalorder %s27, 31
      %s29 = scalar_select %p28, %s27, 31
      %s30 = smul.addr %s29, 8
      %s31 = scalar_lea.vmem %s3, %s30
      %s32 = sadd.s32 0, 0
      %s33 = smul.u32 32, %s32
    $region17: #{feed_forward.1} parent=1 // pred_fallthru
      _
    %s34 = sadd.s32 0, 0
    %s35 = smul.u32 4, %s34
    %p36 = scmp.lt.s32.totalorder %s35, 3
    %s37 = scalar_select %p36, %s35, 3
    %s38 = smul.addr %s37, 8
    %s39 = scalar_lea.vmem %s2, %s38
    %s40 = sadd.s32 0, 0
    %s41 = smul.u32 32, %s40
    %p42 = scmp.lt.s32.totalorder %s41, 31
    %s43 = scalar_select %p42, %s41, 31
    %s44 = smul.addr %s43, 8
    %s45 = scalar_lea.vmem %s3, %s44
    %s46 = sadd.s32 0, 0
    %s47 = smul.u32 4, %s46
    %p48 = scmp.lt.s32.totalorder %s47, 3
    %s49 = scalar_select %p48, %s47, 3
    %s50 = smul.addr %s49, 8
    %s51 = scalar_lea.vmem %s2, %s50
    %s52 = sadd.s32 0, 0
    %s53 = smul.u32 4, %s52
    %s54 = sadd.s32 0, 0
    %s55 = smul.u32 32, %s54
    %p56 = scmp.lt.s32.totalorder %s55, 31
    %s57 = scalar_select %p56, %s55, 31
    %s58 = smul.addr %s57, 8
    %s59 = scalar_lea.vmem %s3, %s58
    %s60 = sadd.s32 0, 0
    %s61 = smul.u32 32, %s60
    %p62 = scmp.eq.s32.totalorder 0, 0
    // Predicated region
    $region18: #{feed_forward.1} parent=1 // pred_check
      %p63 = pneg %p62
    $region19: #{feed_forward.1} parent=1 // pred_check_branch
      %65 = sbr.rel (%p63) target = $region21
    $region20: #{feed_forward.1} parent=1 // pred_region
      %v66 = vld [vmem:[%s0] sm:$0xff]
      %v67 = vld [vmem:[%s0 + $0x8] sm:$0xff]
      %v68 = vmul.f32 %v66, %v66
      %v69 = vmul.f32 %v67, %v67
      %70 = vadd.xlane.f32.xlu0 %v68
      %v71 = vpop.xlane.xlu0 %70
      %72 = vadd.xlane.f32.xlu0 %v69
      %v73 = vpop.xlane.xlu0 %72
      %v74 = vrcp.pop 128.0
      %v75 = vmul.f32 %v71, %v74
      %v76 = vmul.f32 %v73, %v74
      %v77 = vadd.f32 %v75, 1e-06
      %v78 = vadd.f32 %v76, 1e-06
      %v79 = vrsqrt.pop %v77
      %v80 = vrsqrt.pop %v78
      %v81 = vmul.f32 %v66, %v79
      %v82 = vmul.f32 %v67, %v80
      %v83 = vld [vmem:[%s1] sm:$0x1]
      %v85 = vlaneseq
      %v86 = vshrl.u32 %v85, 7
      %v87 = vsub.s32 0, %v86
      %v88 = vrot.slane %v83, %v87
      %v90 = vmul.f32 %v81, %v88
      %v91 = vmul.f32 %v82, %v88
      %92 = vst [vmem:[#allocation2] sm:$0xff] %v90
      %93 = vst [vmem:[#allocation2 + $0x8] sm:$0xff] %v91
      %94 = vst [vmem:[#allocation3] sm:$0xff] 0.0
      %95 = vst [vmem:[#allocation3 + $0x8] sm:$0xff] 0.0
    $region21: #{feed_forward.1} parent=1 // pred_fallthru
      _
    %v96 = vld [vmem:[#allocation2] sm:$0xff]
    %v97 = vld [vmem:[#allocation2 + $0x8] sm:$0xff]
    %v98 = vld [vmem:[%s51] sm:$0xff]
    %v99 = vld [vmem:[%s51 + $0x8] sm:$0xff]
    %v100 = vld [vmem:[%s51 + $0x10] sm:$0xff]
    %v101 = vld [vmem:[%s51 + $0x18] sm:$0xff]
    %v102 = vld [vmem:[%s51 + $0x20] sm:$0xff]
    %v103 = vld [vmem:[%s51 + $0x28] sm:$0xff]
    %v104 = vld [vmem:[%s51 + $0x30] sm:$0xff]
    %v105 = vld [vmem:[%s51 + $0x38] sm:$0xff]
    %v106 = vld [vmem:[%s51 + $0x40] sm:$0xff]
    %v107 = vld [vmem:[%s51 + $0x48] sm:$0xff]
    %v108 = vld [vmem:[%s51 + $0x50] sm:$0xff]
    %v109 = vld [vmem:[%s51 + $0x58] sm:$0xff]
    %v110 = vld [vmem:[%s51 + $0x60] sm:$0xff]
    %v111 = vld [vmem:[%s51 + $0x68] sm:$0xff]
    %v112 = vld [vmem:[%s51 + $0x70] sm:$0xff]
    %v113 = vld [vmem:[%s51 + $0x78] sm:$0xff]
    %v114 = vld [vmem:[%s51 + $0x80] sm:$0xff]
    %v115 = vld [vmem:[%s51 + $0x88] sm:$0xff]
    %v116 = vld [vmem:[%s51 + $0x90] sm:$0xff]
    %v117 = vld [vmem:[%s51 + $0x98] sm:$0xff]
    %v118 = vld [vmem:[%s51 + $0xa0] sm:$0xff]
    %v119 = vld [vmem:[%s51 + $0xa8] sm:$0xff]
    %v120 = vld [vmem:[%s51 + $0xb0] sm:$0xff]
    %v121 = vld [vmem:[%s51 + $0xb8] sm:$0xff]
    %v122 = vld [vmem:[%s51 + $0xc0] sm:$0xff]
    %v123 = vld [vmem:[%s51 + $0xc8] sm:$0xff]
    %v124 = vld [vmem:[%s51 + $0xd0] sm:$0xff]
    %v125 = vld [vmem:[%s51 + $0xd8] sm:$0xff]
    %v126 = vld [vmem:[%s51 + $0xe0] sm:$0xff]
    %v127 = vld [vmem:[%s51 + $0xe8] sm:$0xff]
    %v128 = vld [vmem:[%s51 + $0xf0] sm:$0xff]
    %v129 = vld [vmem:[%s51 + $0xf8] sm:$0xff]
    %v130 = vld [vmem:[%s51 + $0x100] sm:$0xff]
    %v131 = vld [vmem:[%s51 + $0x108] sm:$0xff]
    %v132 = vld [vmem:[%s51 + $0x110] sm:$0xff]
    %v133 = vld [vmem:[%s51 + $0x118] sm:$0xff]
    %v134 = vld [vmem:[%s51 + $0x120] sm:$0xff]
    %v135 = vld [vmem:[%s51 + $0x128] sm:$0xff]
    %v136 = vld [vmem:[%s51 + $0x130] sm:$0xff]
    %v137 = vld [vmem:[%s51 + $0x138] sm:$0xff]
    %v138 = vld [vmem:[%s51 + $0x140] sm:$0xff]
    %v139 = vld [vmem:[%s51 + $0x148] sm:$0xff]
    %v140 = vld [vmem:[%s51 + $0x150] sm:$0xff]
    %v141 = vld [vmem:[%s51 + $0x158] sm:$0xff]
    %v142 = vld [vmem:[%s51 + $0x160] sm:$0xff]
    %v143 = vld [vmem:[%s51 + $0x168] sm:$0xff]
    %v144 = vld [vmem:[%s51 + $0x170] sm:$0xff]
    %v145 = vld [vmem:[%s51 + $0x178] sm:$0xff]
    %v146 = vld [vmem:[%s51 + $0x180] sm:$0xff]
    %v147 = vld [vmem:[%s51 + $0x188] sm:$0xff]
    %v148 = vld [vmem:[%s51 + $0x190] sm:$0xff]
    %v149 = vld [vmem:[%s51 + $0x198] sm:$0xff]
    %v150 = vld [vmem:[%s51 + $0x1a0] sm:$0xff]
    %v151 = vld [vmem:[%s51 + $0x1a8] sm:$0xff]
    %v152 = vld [vmem:[%s51 + $0x1b0] sm:$0xff]
    %v153 = vld [vmem:[%s51 + $0x1b8] sm:$0xff]
    %v154 = vld [vmem:[%s51 + $0x1c0] sm:$0xff]
    %v155 = vld [vmem:[%s51 + $0x1c8] sm:$0xff]
    %v156 = vld [vmem:[%s51 + $0x1d0] sm:$0xff]
    %v157 = vld [vmem:[%s51 + $0x1d8] sm:$0xff]
    %v158 = vld [vmem:[%s51 + $0x1e0] sm:$0xff]
    %v159 = vld [vmem:[%s51 + $0x1e8] sm:$0xff]
    %v160 = vld [vmem:[%s51 + $0x1f0] sm:$0xff]
    %v161 = vld [vmem:[%s51 + $0x1f8] sm:$0xff]
    %162 = vmatprep.subr.mxu0 %v159
    %163 = vmatpush1.msra.mxu0 %v158
    %164 = vmatprep.subr.mxu0 %v155
    %165 = vmatpush1.msra.mxu0 %v154
    %166 = vmatprep.subr.mxu0 %v151
    %167 = vmatpush1.msra.mxu0 %v150
    %168 = vmatprep.subr.mxu0 %v147
    %169 = vmatpush1.msra.mxu0 %v146
    %170 = vmatprep.subr.mxu0 %v143
    %171 = vmatpush1.msra.mxu0 %v142
    %172 = vmatprep.subr.mxu0 %v139
    %173 = vmatpush1.msra.mxu0 %v138
    %174 = vmatprep.subr.mxu0 %v135
    %175 = vmatpush1.msra.mxu0 %v134
    %176 = vmatprep.subr.mxu0 %v131
    %177 = vmatpush1.msra.mxu0 %v130
    %178 = vmatprep.subr.mxu0 %v127
    %179 = vmatpush1.msra.mxu0 %v126
    %180 = vmatprep.subr.mxu0 %v123
    %181 = vmatpush1.msra.mxu0 %v122
    %182 = vmatprep.subr.mxu0 %v119
    %183 = vmatpush1.msra.mxu0 %v118
    %184 = vmatprep.subr.mxu0 %v115
    %185 = vmatpush1.msra.mxu0 %v114
    %186 = vmatprep.subr.mxu0 %v111
    %187 = vmatpush1.msra.mxu0 %v110
    %188 = vmatprep.subr.mxu0 %v107
    %189 = vmatpush1.msra.mxu0 %v106
    %190 = vmatprep.subr.mxu0 %v103
    %191 = vmatpush1.msra.mxu0 %v102
    %192 = vmatprep.subr.mxu0 %v99
    %193 = vmatpush1.msra.mxu0 %v98
    %194 = vmatprep.subr.mxu0 0.0
    %195 = vmatpush2.msra.mxu0 0.0
    %196 = vmatprep.subr.mxu0 0.0
    %197 = vmatpush2.msra.mxu0 0.0
    %198 = vmatprep.subr.mxu0 0.0
    %199 = vmatpush2.msra.mxu0 0.0
    %200 = vmatprep.subr.mxu0 0.0
    %201 = vmatpush2.msra.mxu0 0.0
    %202 = vmatprep.subr.mxu0 0.0
    %203 = vmatpush2.msra.mxu0 0.0
    %204 = vmatprep.subr.mxu0 0.0
    %205 = vmatpush2.msra.mxu0 0.0
    %206 = vmatprep.subr.mxu0 0.0
    %207 = vmatpush2.msra.mxu0 0.0
    %208 = vmatprep.subr.mxu0 0.0
    %209 = vmatpush2.msra.mxu0 0.0
    %210 = vmatprep.subr.mxu0 0.0
    %211 = vmatpush2.msra.mxu0 0.0
    %212 = vmatprep.subr.mxu0 0.0
    %213 = vmatpush2.msra.mxu0 0.0
    %214 = vmatprep.subr.mxu0 0.0
    %215 = vmatpush2.msra.mxu0 0.0
    %216 = vmatprep.subr.mxu0 0.0
    %217 = vmatpush2.msra.mxu0 0.0
    %218 = vmatprep.subr.mxu0 0.0
    %219 = vmatpush2.msra.mxu0 0.0
    %220 = vmatprep.subr.mxu0 0.0
    %221 = vmatpush2.msra.mxu0 0.0
    %222 = vmatprep.subr.mxu0 0.0
    %223 = vmatpush2.msra.mxu0 0.0
    %224 = vmatprep.subr.mxu0 0.0
    %225 = vmatpush2.msra.mxu0 0.0
    %226 = vmatprep.mubr.f32.mxu0 0.0
    %227 = vmatmul.mubr.f32.gmra.mxu0 %v96
    %v228 = vpop.f32.mrf.mxu0
    %v229 = vadd.f32 0.0, %v228
    %v230 = vpop.f32.mrf.mxu0
    %v231 = vadd.f32 0.0, %v230
    %232 = vmatprep.mubr.f32.mxu0 0.0
    %233 = vmatmul.mubr.f32.gmra.mxu0 %v97
    %v234 = vpop.f32.mrf.mxu0
    %v235 = vadd.f32 0.0, %v234
    %v236 = vpop.f32.mrf.mxu0
    %v237 = vadd.f32 0.0, %v236
    %238 = vdwg.mxu0
    %239 = vmatprep.subr.mxu0 %v161
    %240 = vmatpush1.msra.mxu0 %v160
    %241 = vmatprep.subr.mxu0 %v157
    %242 = vmatpush1.msra.mxu0 %v156
    %243 = vmatprep.subr.mxu0 %v153
    %244 = vmatpush1.msra.mxu0 %v152
    %245 = vmatprep.subr.mxu0 %v149
    %246 = vmatpush1.msra.mxu0 %v148
    %247 = vmatprep.subr.mxu0 %v145
    %248 = vmatpush1.msra.mxu0 %v144
    %249 = vmatprep.subr.mxu0 %v141
    %250 = vmatpush1.msra.mxu0 %v140
    %251 = vmatprep.subr.mxu0 %v137
    %252 = vmatpush1.msra.mxu0 %v136
    %253 = vmatprep.subr.mxu0 %v133
    %254 = vmatpush1.msra.mxu0 %v132
    %255 = vmatprep.subr.mxu0 %v129
    %256 = vmatpush1.msra.mxu0 %v128
    %257 = vmatprep.subr.mxu0 %v125
    %258 = vmatpush1.msra.mxu0 %v124
    %259 = vmatprep.subr.mxu0 %v121
    %260 = vmatpush1.msra.mxu0 %v120
    %261 = vmatprep.subr.mxu0 %v117
    %262 = vmatpush1.msra.mxu0 %v116
    %263 = vmatprep.subr.mxu0 %v113
    %264 = vmatpush1.msra.mxu0 %v112
    %265 = vmatprep.subr.mxu0 %v109
    %266 = vmatpush1.msra.mxu0 %v108
    %267 = vmatprep.subr.mxu0 %v105
    %268 = vmatpush1.msra.mxu0 %v104
    %269 = vmatprep.subr.mxu0 %v101
    %270 = vmatpush1.msra.mxu0 %v100
    %271 = vmatprep.subr.mxu0 0.0
    %272 = vmatpush2.msra.mxu0 0.0
    %273 = vmatprep.subr.mxu0 0.0
    %274 = vmatpush2.msra.mxu0 0.0
    %275 = vmatprep.subr.mxu0 0.0
    %276 = vmatpush2.msra.mxu0 0.0
    %277 = vmatprep.subr.mxu0 0.0
    %278 = vmatpush2.msra.mxu0 0.0
    %279 = vmatprep.subr.mxu0 0.0
    %280 = vmatpush2.msra.mxu0 0.0
    %281 = vmatprep.subr.mxu0 0.0
    %282 = vmatpush2.msra.mxu0 0.0
    %283 = vmatprep.subr.mxu0 0.0
    %284 = vmatpush2.msra.mxu0 0.0
    %285 = vmatprep.subr.mxu0 0.0
    %286 = vmatpush2.msra.mxu0 0.0
    %287 = vmatprep.subr.mxu0 0.0
    %288 = vmatpush2.msra.mxu0 0.0
    %289 = vmatprep.subr.mxu0 0.0
    %290 = vmatpush2.msra.mxu0 0.0
    %291 = vmatprep.subr.mxu0 0.0
    %292 = vmatpush2.msra.mxu0 0.0
    %293 = vmatprep.subr.mxu0 0.0
    %294 = vmatpush2.msra.mxu0 0.0
    %295 = vmatprep.subr.mxu0 0.0
    %296 = vmatpush2.msra.mxu0 0.0
    %297 = vmatprep.subr.mxu0 0.0
    %298 = vmatpush2.msra.mxu0 0.0
    %299 = vmatprep.subr.mxu0 0.0
    %300 = vmatpush2.msra.mxu0 0.0
    %301 = vmatprep.subr.mxu0 0.0
    %302 = vmatpush2.msra.mxu0 0.0
    %303 = vmatprep.mubr.f32.mxu0 0.0
    %304 = vmatmul.mubr.f32.gmra.mxu0 %v96
    %v305 = vpop.f32.mrf.mxu0
    %v306 = vadd.f32 0.0, %v305
    %v307 = vpop.f32.mrf.mxu0
    %v308 = vadd.f32 0.0, %v307
    %309 = vmatprep.mubr.f32.mxu0 0.0
    %310 = vmatmul.mubr.f32.gmra.mxu0 %v97
    %v311 = vpop.f32.mrf.mxu0
    %v312 = vadd.f32 0.0, %v311
    %v313 = vpop.f32.mrf.mxu0
    %v314 = vadd.f32 0.0, %v313
    %315 = vdwg.mxu0
    %v316 = vxor.u32 %v229, 2147483648
    %v317 = vxor.u32 %v231, 2147483648
    %v318 = vxor.u32 %v235, 2147483648
    %v319 = vxor.u32 %v237, 2147483648
    %v320 = vmul.f32 %v316, 1.442695
    %v321 = vpow.pop %v320
    %v322 = vmul.f32 %v317, 1.442695
    %v323 = vpow.pop %v322
    %v324 = vmul.f32 %v318, 1.442695
    %v325 = vpow.pop %v324
    %v326 = vmul.f32 %v319, 1.442695
    %v327 = vpow.pop %v326
    %v328 = vadd.f32 %v321, 1.0
    %v329 = vadd.f32 %v323, 1.0
    %v330 = vadd.f32 %v325, 1.0
    %v331 = vadd.f32 %v327, 1.0
    %v332 = vrcp.pop %v328
    %v333 = vmul.f32 1.0, %v332
    %v334 = vrcp.pop %v329
    %v335 = vmul.f32 1.0, %v334
    %v336 = vrcp.pop %v330
    %v337 = vmul.f32 1.0, %v336
    %v338 = vrcp.pop %v331
    %v339 = vmul.f32 1.0, %v338
    %v340 = vmul.f32 %v229, %v333
    %v341 = vmul.f32 %v231, %v335
    %v342 = vmul.f32 %v235, %v337
    %v343 = vmul.f32 %v237, %v339
    %v344 = vmul.f32 %v340, %v306
    %v345 = vmul.f32 %v341, %v308
    %v346 = vmul.f32 %v342, %v312
    %v347 = vmul.f32 %v343, %v314
    %v348 = vld [vmem:[#allocation3] sm:$0xff]
    %v349 = vld [vmem:[#allocation3 + $0x8] sm:$0xff]
    %v350 = vld [vmem:[%s59] sm:$0xff]
    %v351 = vld [vmem:[%s59 + $0x8] sm:$0xff]
    %v352 = vld [vmem:[%s59 + $0x10] sm:$0xff]
    %v353 = vld [vmem:[%s59 + $0x18] sm:$0xff]
    %v354 = vld [vmem:[%s59 + $0x20] sm:$0xff]
    %v355 = vld [vmem:[%s59 + $0x28] sm:$0xff]
    %v356 = vld [vmem:[%s59 + $0x30] sm:$0xff]
    %v357 = vld [vmem:[%s59 + $0x38] sm:$0xff]
    %v358 = vld [vmem:[%s59 + $0x40] sm:$0xff]
    %v359 = vld [vmem:[%s59 + $0x48] sm:$0xff]
    %v360 = vld [vmem:[%s59 + $0x50] sm:$0xff]
    %v361 = vld [vmem:[%s59 + $0x58] sm:$0xff]
    %v362 = vld [vmem:[%s59 + $0x60] sm:$0xff]
    %v363 = vld [vmem:[%s59 + $0x68] sm:$0xff]
    %v364 = vld [vmem:[%s59 + $0x70] sm:$0xff]
    %v365 = vld [vmem:[%s59 + $0x78] sm:$0xff]
    %v366 = vld [vmem:[%s59 + $0x80] sm:$0xff]
    %v367 = vld [vmem:[%s59 + $0x88] sm:$0xff]
    %v368 = vld [vmem:[%s59 + $0x90] sm:$0xff]
    %v369 = vld [vmem:[%s59 + $0x98] sm:$0xff]
    %v370 = vld [vmem:[%s59 + $0xa0] sm:$0xff]
    %v371 = vld [vmem:[%s59 + $0xa8] sm:$0xff]
    %v372 = vld [vmem:[%s59 + $0xb0] sm:$0xff]
    %v373 = vld [vmem:[%s59 + $0xb8] sm:$0xff]
    %v374 = vld [vmem:[%s59 + $0xc0] sm:$0xff]
    %v375 = vld [vmem:[%s59 + $0xc8] sm:$0xff]
    %v376 = vld [vmem:[%s59 + $0xd0] sm:$0xff]
    %v377 = vld [vmem:[%s59 + $0xd8] sm:$0xff]
    %v378 = vld [vmem:[%s59 + $0xe0] sm:$0xff]
    %v379 = vld [vmem:[%s59 + $0xe8] sm:$0xff]
    %v380 = vld [vmem:[%s59 + $0xf0] sm:$0xff]
    %v381 = vld [vmem:[%s59 + $0xf8] sm:$0xff]
    %382 = vmatprep.subr.mxu0 0.0
    %383 = vmatpush1.msra.mxu0 %v365
    %384 = vmatprep.subr.mxu0 0.0
    %385 = vmatpush1.msra.mxu0 %v364
    %386 = vmatprep.subr.mxu0 0.0
    %387 = vmatpush1.msra.mxu0 %v363
    %388 = vmatprep.subr.mxu0 0.0
    %389 = vmatpush1.msra.mxu0 %v362
    %390 = vmatprep.subr.mxu0 0.0
    %391 = vmatpush1.msra.mxu0 %v361
    %392 = vmatprep.subr.mxu0 0.0
    %393 = vmatpush1.msra.mxu0 %v360
    %394 = vmatprep.subr.mxu0 0.0
    %395 = vmatpush1.msra.mxu0 %v359
    %396 = vmatprep.subr.mxu0 0.0
    %397 = vmatpush1.msra.mxu0 %v358
    %398 = vmatprep.subr.mxu0 0.0
    %399 = vmatpush1.msra.mxu0 %v357
    %400 = vmatprep.subr.mxu0 0.0
    %401 = vmatpush1.msra.mxu0 %v356
    %402 = vmatprep.subr.mxu0 0.0
    %403 = vmatpush1.msra.mxu0 %v355
    %404 = vmatprep.subr.mxu0 0.0
    %405 = vmatpush1.msra.mxu0 %v354
    %406 = vmatprep.subr.mxu0 0.0
    %407 = vmatpush1.msra.mxu0 %v353
    %408 = vmatprep.subr.mxu0 0.0
    %409 = vmatpush1.msra.mxu0 %v352
    %410 = vmatprep.subr.mxu0 0.0
    %411 = vmatpush1.msra.mxu0 %v351
    %412 = vmatprep.subr.mxu0 0.0
    %413 = vmatpush1.msra.mxu0 %v350
    %414 = vmatprep.subr.mxu0 0.0
    %415 = vmatpush2.msra.mxu0 %v381
    %416 = vmatprep.subr.mxu0 0.0
    %417 = vmatpush2.msra.mxu0 %v380
    %418 = vmatprep.subr.mxu0 0.0
    %419 = vmatpush2.msra.mxu0 %v379
    %420 = vmatprep.subr.mxu0 0.0
    %421 = vmatpush2.msra.mxu0 %v378
    %422 = vmatprep.subr.mxu0 0.0
    %423 = vmatpush2.msra.mxu0 %v377
    %424 = vmatprep.subr.mxu0 0.0
    %425 = vmatpush2.msra.mxu0 %v376
    %426 = vmatprep.subr.mxu0 0.0
    %427 = vmatpush2.msra.mxu0 %v375
    %428 = vmatprep.subr.mxu0 0.0
    %429 = vmatpush2.msra.mxu0 %v374
    %430 = vmatprep.subr.mxu0 0.0
    %431 = vmatpush2.msra.mxu0 %v373
    %432 = vmatprep.subr.mxu0 0.0
    %433 = vmatpush2.msra.mxu0 %v372
    %434 = vmatprep.subr.mxu0 0.0
    %435 = vmatpush2.msra.mxu0 %v371
    %436 = vmatprep.subr.mxu0 0.0
    %437 = vmatpush2.msra.mxu0 %v370
    %438 = vmatprep.subr.mxu0 0.0
    %439 = vmatpush2.msra.mxu0 %v369
    %440 = vmatprep.subr.mxu0 0.0
    %441 = vmatpush2.msra.mxu0 %v368
    %442 = vmatprep.subr.mxu0 0.0
    %443 = vmatpush2.msra.mxu0 %v367
    %444 = vmatprep.subr.mxu0 0.0
    %445 = vmatpush2.msra.mxu0 %v366
    %446 = vmatprep.mubr.f32.mxu0 %v345
    %447 = vmatmul.mubr.f32.gmra.mxu0 %v344
    %v448 = vpop.f32.mrf.mxu0
    %v449 = vadd.f32 0.0, %v448
    %v450 = vpop.f32.mrf.mxu0
    %451 = vmatprep.mubr.f32.mxu0 %v347
    %452 = vmatmul.mubr.f32.gmra.mxu0 %v346
    %v453 = vpop.f32.mrf.mxu0
    %v454 = vadd.f32 0.0, %v453
    %v455 = vpop.f32.mrf.mxu0
    %456 = vdwg.mxu0
    %v457 = vadd.f32 %v348, %v449
    %v458 = vadd.f32 %v349, %v454
    %459 = vst [vmem:[#allocation3] sm:$0xff] %v457
    %460 = vst [vmem:[#allocation3 + $0x8] sm:$0xff] %v458
    // Predicated region
    $region22: #{feed_forward.1} parent=1 // pred_check
      %p461 = pneg %p62
    $region23: #{feed_forward.1} parent=1 // pred_check_branch
      %463 = sbr.rel (%p461) target = $region25
    $region24: #{feed_forward.1} parent=1 // pred_region
      %v464 = vld [vmem:[#allocation3] sm:$0xff]
      %v465 = vld [vmem:[#allocation3 + $0x8] sm:$0xff]
      %466 = vst [vmem:[#allocation4] sm:$0xff] %v464
      %467 = vst [vmem:[#allocation4 + $0x8] sm:$0xff] %v465
    $region25: #{feed_forward.1} parent=1 // pred_fallthru
      _
    // Predicated region
    $region26: #{feed_forward.1} parent=1 // pred_check
      _
    $region27: #{feed_forward.1} parent=1 // pred_check_branch
      %469 = sbr.rel (0) target = $region29
    $region28: #{feed_forward.1} parent=1 // pred_region
      %s471 = ssub.s32 256, 256
      %472 = vsyncadd [#allocation5], %s471
      %s473 = sshll.u32 [#allocation4], 4
      %s474 = int_to_ptr.vmem [resolvable:$true] %s473
      %479 = dma.vmem_to_hbm [thread:$0]  %s474, 256, %s4, [#allocation5], 128, 128, 8
    $region29: #{feed_forward.1} parent=1 // pred_fallthru
      _
    // Predicated region
    $region30: #{feed_forward.1} parent=1 // pred_check
      _
    $region31: #{feed_forward.1} parent=1 // pred_check_branch
      %481 = sbr.rel (0) target = $region33
    $region32: #{feed_forward.1} parent=1 // pred_region
      %482 = dma.done [#allocation5], 256
    $region33: #{feed_forward.1} parent=1 // pred_fallthru
      _
    %483 = vsyncpa [#allocation5], 1

</llo_original>
